<compile_context>
chip_gen: v7x
topology: tpu7x:2x2x1
jax: 0.10.0
libtpu: 0.0.40
codegen_flags: <defaults>
</compile_context>

<pallas_src>
import functools

import jax
import jax.numpy as jnp
from jax import lax
from jax.experimental import pallas as pl
from jax.experimental.pallas import tpu as pltpu

EPS = 1e-5


def resnet_block_kernel(x_ref,
                        w1_ref, g1_ref, be1_ref,
                        w2_ref, g2_ref, be2_ref,
                        w3_ref, g3_ref, be3_ref,
                        ws_ref, gs_ref, bes_ref,
                        o_ref, *, seq_len):
    C, NL = x_ref.shape
    L = seq_len
    inv_m = 1.0 / float(NL)

    x = x_ref[...]                                        # (C, N*L) f32

    # Per-sample boundary masks, computed once and reused by all 3-tap layers.
    col = lax.broadcasted_iota(jnp.int32, (1, NL), 1)
    has_left = (col % L) != 0            # lane j has a left neighbour j-1
    has_right = (col % L) != (L - 1)     # lane j has a right neighbour j+1

    zero_col = jnp.zeros((C, 1), jnp.float32)

    def bn(y, g_ref, b_ref, relu):
        # Training-mode BatchNorm1d (biased variance over N*L), one stats pass
        # (lane reductions) + one FMA per element, all f32.
        s1 = jnp.sum(y, axis=1, keepdims=True)            # (C, 1)
        s2 = jnp.sum(y * y, axis=1, keepdims=True)        # (C, 1)
        mean = s1 * inv_m
        var = s2 * inv_m - mean * mean
        scale = g_ref[...] * lax.rsqrt(var + EPS)         # (C, 1)
        shift = b_ref[...] - mean * scale
        out = y * scale + shift
        return jnp.maximum(out, 0.0) if relu else out

    def conv3_bn(h, w_ref, g_ref, b_ref, relu):
        # K=3, padding=1 conv as a single whole-batch im2col matmul.
        # Neighbours via 1-lane shift + per-sample boundary masking; conv bias
        # intentionally omitted (a no-op under training-mode BN).
        left = jnp.where(has_left,
                         jnp.concatenate([zero_col, h[:, :NL - 1]], axis=1),
                         0.0)                             # out[:, j] = h[:, j-1]
        right = jnp.where(has_right,
                          jnp.concatenate([h[:, 1:], zero_col], axis=1),
                          0.0)                            # out[:, j] = h[:, j+1]
        xcol = jnp.concatenate([left, h, right], axis=0).astype(jnp.bfloat16)
        y = jnp.dot(w_ref[...], xcol,                     # (C, 3C) @ (3C, N*L)
                    preferred_element_type=jnp.float32)
        return bn(y, g_ref, b_ref, relu)

    h = conv3_bn(x, w1_ref, g1_ref, be1_ref, relu=True)
    h = conv3_bn(h, w2_ref, g2_ref, be2_ref, relu=True)
    h = conv3_bn(h, w3_ref, g3_ref, be3_ref, relu=False)

    # 1x1 shortcut conv: plain channel-mixing matmul over the whole batch.
    s = jnp.dot(ws_ref[...], x.astype(jnp.bfloat16),
                preferred_element_type=jnp.float32)
    s = bn(s, gs_ref, bes_ref, relu=False)

    o_ref[...] = jnp.maximum(h + s, 0.0)


def resnet_block_pallas(x_ncl, params):
    """x_ncl: (N, C, L) float32, PyTorch NCL layout.  Returns (N, C, L)."""
    N, C, L = x_ncl.shape
    NL = N * L

    def wmat(w):  # PyTorch (Cout, Cin, K) -> (Cout, K*Cin) bf16, tap-major
        Co, Ci, K = w.shape
        return jnp.transpose(w, (0, 2, 1)).reshape(Co, K * Ci).astype(jnp.bfloat16)

    def vec(p):   # (C,) -> (C, 1) f32 for per-channel (sublane) broadcasting
        return p.reshape(C, 1).astype(jnp.float32)

    # Lane-dense kernel layout: channels on sublanes, batch*length on lanes.
    x_2d = jnp.transpose(x_ncl, (1, 0, 2)).reshape(C, NL).astype(jnp.float32)

    ins = (
        x_2d,
        wmat(params["w1"]), vec(params["g1"]), vec(params["be1"]),
        wmat(params["w2"]), vec(params["g2"]), vec(params["be2"]),
        wmat(params["w3"]), vec(params["g3"]), vec(params["be3"]),
        wmat(params["ws"]), vec(params["gs"]), vec(params["bes"]),
    )

    vmem = pl.BlockSpec(memory_space=pltpu.MemorySpace.VMEM)
    out_2d = pl.pallas_call(
        functools.partial(resnet_block_kernel, seq_len=L),
        out_shape=jax.ShapeDtypeStruct((C, NL), jnp.float32),
        in_specs=[vmem] * len(ins),
        out_specs=vmem,
    )(*ins)

    return jnp.transpose(out_2d.reshape(C, N, L), (1, 0, 2))


# ---------------------------------------------------------------- reference --
def resnet_block_ref(x, p):
    """Pure-JAX reference with PyTorch semantics (conv bias + training-mode BN)."""
    def conv(h, w, b, pad):
        y = lax.conv_general_dilated(
            h, w, window_strides=(1,), padding=[(pad, pad)],
            dimension_numbers=("NCH", "OIH", "NCH"))
        return y + b[None, :, None]

    def bn(h, g, be):
        mean = h.mean(axis=(0, 2), keepdims=True)
        var = ((h - mean) ** 2).mean(axis=(0, 2), keepdims=True)
        return (h - mean) / jnp.sqrt(var + EPS) * g[None, :, None] + be[None, :, None]

    h = jax.nn.relu(bn(conv(x, p["w1"], p["b1"], 1), p["g1"], p["be1"]))
    h = jax.nn.relu(bn(conv(h, p["w2"], p["b2"], 1), p["g2"], p["be2"]))
    h = bn(conv(h, p["w3"], p["b3"], 1), p["g3"], p["be3"])
    s = bn(conv(x, p["ws"], p["bs"], 0), p["gs"], p["bes"])
    return jax.nn.relu(h + s)


def init_params(key, C, n_kernels):
    keys = jax.random.split(key, 16)
    k1, k2, k3 = n_kernels

    def w(k, K):  # PyTorch Conv1d weight layout (Cout, Cin, K)
        return (0.1 * jax.random.normal(k, (C, C, K))).astype(jnp.float32)

    def v(k, scale=0.1, offset=0.0):
        return (offset + scale * jax.random.normal(k, (C,))).astype(jnp.float32)

    return dict(
        w1=w(keys[0], k1), b1=v(keys[1]), g1=v(keys[2], offset=1.0), be1=v(keys[3]),
        w2=w(keys[4], k2), b2=v(keys[5]), g2=v(keys[6], offset=1.0), be2=v(keys[7]),
        w3=w(keys[8], k3), b3=v(keys[9]), g3=v(keys[10], offset=1.0), be3=v(keys[11]),
        ws=w(keys[12], 1), bs=v(keys[13]), gs=v(keys[14], offset=1.0), bes=v(keys[15]),
    )


if __name__ == "__main__":
    N, C, L = 2, 8, 16              # batch, n_filters, sequence length
    n_kernels = [3, 3, 3]           # kernel sizes (padding=1 keeps L fixed)

    key = jax.random.PRNGKey(0)
    kx, kp = jax.random.split(key)
    x = jax.random.normal(kx, (N, C, L), dtype=jnp.float32)   # PyTorch NCL layout
    params = init_params(kp, C, n_kernels)

    out = jax.block_until_ready(resnet_block_pallas(x, params))
    ref = jax.block_until_ready(resnet_block_ref(x, params))

    assert out.shape == (N, C, L)
    # bf16 MXU operands through 4 stacked conv+BN layers -> looser tolerance
    # than the pure-f32 path; BN statistics themselves are kept in f32.
    assert jnp.allclose(out, ref, atol=1e-1, rtol=1e-1), (
        f"max abs err = {float(jnp.max(jnp.abs(out - ref)))}")

    print("KERNEL_OK")
</pallas_src>

<mosaic_0001>
module attributes {stable_mosaic.version = 11 : i64} {
  func.func @resnet_block_kernel(%arg0: memref<8x32xf32, #tpu.memory_space<vmem>>, %arg1: memref<8x24xbf16, #tpu.memory_space<vmem>>, %arg2: memref<8x1xf32, #tpu.memory_space<vmem>>, %arg3: memref<8x1xf32, #tpu.memory_space<vmem>>, %arg4: memref<8x24xbf16, #tpu.memory_space<vmem>>, %arg5: memref<8x1xf32, #tpu.memory_space<vmem>>, %arg6: memref<8x1xf32, #tpu.memory_space<vmem>>, %arg7: memref<8x24xbf16, #tpu.memory_space<vmem>>, %arg8: memref<8x1xf32, #tpu.memory_space<vmem>>, %arg9: memref<8x1xf32, #tpu.memory_space<vmem>>, %arg10: memref<8x8xbf16, #tpu.memory_space<vmem>>, %arg11: memref<8x1xf32, #tpu.memory_space<vmem>>, %arg12: memref<8x1xf32, #tpu.memory_space<vmem>>, %arg13: memref<8x32xf32, #tpu.memory_space<vmem>>) attributes {dimension_semantics = [], scalar_prefetch = 0 : i64, scratch_operands = 0 : i64, tpu.core_type = #tpu.core_type<tc>} {
    %c0 = arith.constant 0 : index
    %c0_0 = arith.constant 0 : index
    %0 = vector.load %arg0[%c0, %c0_0] : memref<8x32xf32, #tpu.memory_space<vmem>>, vector<8x32xf32>
    %1 = tpu.iota {dimensions = array<i32: 1>} : vector<1x32xi32>
    %c16_i32 = arith.constant 16 : i32
    %c0_i32 = arith.constant 0 : i32
    %2 = arith.cmpi eq, %c16_i32, %c0_i32 : i32
    %c1_i32 = arith.constant 1 : i32
    %3 = arith.select %2, %c1_i32, %c16_i32 : i32
    %4 = vector.broadcast %3 : i32 to vector<1x32xi32>
    %5 = arith.remsi %1, %4 : vector<1x32xi32>
    %c0_i32_1 = arith.constant 0 : i32
    %6 = vector.broadcast %c0_i32_1 : i32 to vector<1x32xi32>
    %7 = arith.cmpi ne, %5, %6 : vector<1x32xi32>
    %c0_i32_2 = arith.constant 0 : i32
    %8 = vector.broadcast %c0_i32_2 : i32 to vector<1x32xi32>
    %9 = arith.cmpi slt, %5, %8 : vector<1x32xi32>
    %c0_i32_3 = arith.constant 0 : i32
    %10 = arith.cmpi slt, %3, %c0_i32_3 : i32
    %11 = vector.broadcast %10 : i1 to vector<1x32xi1>
    %12 = vector.broadcast %11 : vector<1x32xi1> to vector<1x32xi1>
    %13 = arith.xori %9, %12 : vector<1x32xi1>
    %14 = arith.andi %13, %7 : vector<1x32xi1>
    %15 = vector.broadcast %3 : i32 to vector<1x32xi32>
    %16 = arith.addi %5, %15 : vector<1x32xi32>
    %17 = arith.select %14, %16, %5 : vector<1x32xi1>, vector<1x32xi32>
    %c0_i32_4 = arith.constant 0 : i32
    %18 = vector.broadcast %c0_i32_4 : i32 to vector<1x32xi32>
    %19 = arith.cmpi ne, %17, %18 : vector<1x32xi32>
    %c16_i32_5 = arith.constant 16 : i32
    %c0_i32_6 = arith.constant 0 : i32
    %20 = arith.cmpi eq, %c16_i32_5, %c0_i32_6 : i32
    %c1_i32_7 = arith.constant 1 : i32
    %21 = arith.select %20, %c1_i32_7, %c16_i32_5 : i32
    %22 = vector.broadcast %21 : i32 to vector<1x32xi32>
    %23 = arith.remsi %1, %22 : vector<1x32xi32>
    %c0_i32_8 = arith.constant 0 : i32
    %24 = vector.broadcast %c0_i32_8 : i32 to vector<1x32xi32>
    %25 = arith.cmpi ne, %23, %24 : vector<1x32xi32>
    %c0_i32_9 = arith.constant 0 : i32
    %26 = vector.broadcast %c0_i32_9 : i32 to vector<1x32xi32>
    %27 = arith.cmpi slt, %23, %26 : vector<1x32xi32>
    %c0_i32_10 = arith.constant 0 : i32
    %28 = arith.cmpi slt, %21, %c0_i32_10 : i32
    %29 = vector.broadcast %28 : i1 to vector<1x32xi1>
    %30 = vector.broadcast %29 : vector<1x32xi1> to vector<1x32xi1>
    %31 = arith.xori %27, %30 : vector<1x32xi1>
    %32 = arith.andi %31, %25 : vector<1x32xi1>
    %33 = vector.broadcast %21 : i32 to vector<1x32xi32>
    %34 = arith.addi %23, %33 : vector<1x32xi32>
    %35 = arith.select %32, %34, %23 : vector<1x32xi1>, vector<1x32xi32>
    %c15_i32 = arith.constant 15 : i32
    %36 = vector.broadcast %c15_i32 : i32 to vector<1x32xi32>
    %37 = arith.cmpi ne, %35, %36 : vector<1x32xi32>
    %cst = arith.constant 0.000000e+00 : f32
    %38 = vector.broadcast %cst : f32 to vector<8x1xf32>
    %39 = vector.extract_strided_slice %0 {offsets = [0, 0], sizes = [8, 31], strides = [1, 1]} : vector<8x32xf32> to vector<8x31xf32>
    %40 = tpu.concatenate %38, %39 in 1 : vector<8x1xf32>, vector<8x31xf32> -> vector<8x32xf32>
    %cst_11 = arith.constant 0.000000e+00 : f32
    %41 = vector.shape_cast %19 : vector<1x32xi1> to vector<1x32xi1>
    %42 = vector.broadcast %41 : vector<1x32xi1> to vector<8x32xi1>
    %43 = vector.broadcast %cst_11 : f32 to vector<8x32xf32>
    %44 = arith.select %42, %40, %43 : vector<8x32xi1>, vector<8x32xf32>
    %45 = vector.extract_strided_slice %0 {offsets = [0, 1], sizes = [8, 31], strides = [1, 1]} : vector<8x32xf32> to vector<8x31xf32>
    %46 = tpu.concatenate %45, %38 in 1 : vector<8x31xf32>, vector<8x1xf32> -> vector<8x32xf32>
    %cst_12 = arith.constant 0.000000e+00 : f32
    %47 = vector.shape_cast %37 : vector<1x32xi1> to vector<1x32xi1>
    %48 = vector.broadcast %47 : vector<1x32xi1> to vector<8x32xi1>
    %49 = vector.broadcast %cst_12 : f32 to vector<8x32xf32>
    %50 = arith.select %48, %46, %49 : vector<8x32xi1>, vector<8x32xf32>
    %51 = tpu.concatenate %44, %0, %50 in 0 : vector<8x32xf32>, vector<8x32xf32>, vector<8x32xf32> -> vector<24x32xf32>
    %52 = arith.truncf %51 : vector<24x32xf32> to vector<24x32xbf16>
    %c0_13 = arith.constant 0 : index
    %c0_14 = arith.constant 0 : index
    %53 = vector.load %arg1[%c0_13, %c0_14] : memref<8x24xbf16, #tpu.memory_space<vmem>>, vector<8x24xbf16>
    %cst_15 = arith.constant dense<0.000000e+00> : vector<8x32xf32>
    %54 = tpu.matmul %53, %52, %cst_15 {dimension_numbers = #tpu.dot_dimension_numbers<[1], [0], [0], [1], [0, 0, 1, 1], [], []>} : vector<8x24xbf16>, vector<24x32xbf16>, vector<8x32xf32> -> vector<8x32xf32>
    %cst_16 = arith.constant dense<0.000000e+00> : vector<8xf32>
    %55 = vector.multi_reduction <add>, %54, %cst_16 [1] : vector<8x32xf32> to vector<8xf32>
    %56 = vector.shape_cast %55 : vector<8xf32> to vector<8x1xf32>
    %57 = arith.mulf %54, %54 : vector<8x32xf32>
    %cst_17 = arith.constant dense<0.000000e+00> : vector<8xf32>
    %58 = vector.multi_reduction <add>, %57, %cst_17 [1] : vector<8x32xf32> to vector<8xf32>
    %59 = vector.shape_cast %58 : vector<8xf32> to vector<8x1xf32>
    %cst_18 = arith.constant 3.125000e-02 : f32
    %60 = vector.broadcast %cst_18 : f32 to vector<8x1xf32>
    %61 = arith.mulf %56, %60 : vector<8x1xf32>
    %cst_19 = arith.constant 3.125000e-02 : f32
    %62 = vector.broadcast %cst_19 : f32 to vector<8x1xf32>
    %63 = arith.mulf %59, %62 : vector<8x1xf32>
    %64 = arith.mulf %61, %61 : vector<8x1xf32>
    %65 = arith.subf %63, %64 : vector<8x1xf32>
    %c0_20 = arith.constant 0 : index
    %c0_21 = arith.constant 0 : index
    %66 = vector.load %arg2[%c0_20, %c0_21] : memref<8x1xf32, #tpu.memory_space<vmem>>, vector<8x1xf32>
    %cst_22 = arith.constant 9.99999974E-6 : f32
    %67 = vector.broadcast %cst_22 : f32 to vector<8x1xf32>
    %68 = arith.addf %65, %67 : vector<8x1xf32>
    %69 = math.rsqrt %68 : vector<8x1xf32>
    %70 = arith.mulf %66, %69 : vector<8x1xf32>
    %c0_23 = arith.constant 0 : index
    %c0_24 = arith.constant 0 : index
    %71 = vector.load %arg3[%c0_23, %c0_24] : memref<8x1xf32, #tpu.memory_space<vmem>>, vector<8x1xf32>
    %72 = arith.mulf %61, %70 : vector<8x1xf32>
    %73 = arith.subf %71, %72 : vector<8x1xf32>
    %74 = vector.broadcast %70 : vector<8x1xf32> to vector<8x32xf32>
    %75 = arith.mulf %54, %74 : vector<8x32xf32>
    %76 = vector.broadcast %73 : vector<8x1xf32> to vector<8x32xf32>
    %77 = arith.addf %75, %76 : vector<8x32xf32>
    %cst_25 = arith.constant 0.000000e+00 : f32
    %78 = vector.broadcast %cst_25 : f32 to vector<8x32xf32>
    %79 = arith.maximumf %77, %78 : vector<8x32xf32>
    %80 = vector.extract_strided_slice %79 {offsets = [0, 0], sizes = [8, 31], strides = [1, 1]} : vector<8x32xf32> to vector<8x31xf32>
    %81 = tpu.concatenate %38, %80 in 1 : vector<8x1xf32>, vector<8x31xf32> -> vector<8x32xf32>
    %cst_26 = arith.constant 0.000000e+00 : f32
    %82 = vector.shape_cast %19 : vector<1x32xi1> to vector<1x32xi1>
    %83 = vector.broadcast %82 : vector<1x32xi1> to vector<8x32xi1>
    %84 = vector.broadcast %cst_26 : f32 to vector<8x32xf32>
    %85 = arith.select %83, %81, %84 : vector<8x32xi1>, vector<8x32xf32>
    %86 = vector.extract_strided_slice %79 {offsets = [0, 1], sizes = [8, 31], strides = [1, 1]} : vector<8x32xf32> to vector<8x31xf32>
    %87 = tpu.concatenate %86, %38 in 1 : vector<8x31xf32>, vector<8x1xf32> -> vector<8x32xf32>
    %cst_27 = arith.constant 0.000000e+00 : f32
    %88 = vector.shape_cast %37 : vector<1x32xi1> to vector<1x32xi1>
    %89 = vector.broadcast %88 : vector<1x32xi1> to vector<8x32xi1>
    %90 = vector.broadcast %cst_27 : f32 to vector<8x32xf32>
    %91 = arith.select %89, %87, %90 : vector<8x32xi1>, vector<8x32xf32>
    %92 = tpu.concatenate %85, %79, %91 in 0 : vector<8x32xf32>, vector<8x32xf32>, vector<8x32xf32> -> vector<24x32xf32>
    %93 = arith.truncf %92 : vector<24x32xf32> to vector<24x32xbf16>
    %c0_28 = arith.constant 0 : index
    %c0_29 = arith.constant 0 : index
    %94 = vector.load %arg4[%c0_28, %c0_29] : memref<8x24xbf16, #tpu.memory_space<vmem>>, vector<8x24xbf16>
    %cst_30 = arith.constant dense<0.000000e+00> : vector<8x32xf32>
    %95 = tpu.matmul %94, %93, %cst_30 {dimension_numbers = #tpu.dot_dimension_numbers<[1], [0], [0], [1], [0, 0, 1, 1], [], []>} : vector<8x24xbf16>, vector<24x32xbf16>, vector<8x32xf32> -> vector<8x32xf32>
    %cst_31 = arith.constant dense<0.000000e+00> : vector<8xf32>
    %96 = vector.multi_reduction <add>, %95, %cst_31 [1] : vector<8x32xf32> to vector<8xf32>
    %97 = vector.shape_cast %96 : vector<8xf32> to vector<8x1xf32>
    %98 = arith.mulf %95, %95 : vector<8x32xf32>
    %cst_32 = arith.constant dense<0.000000e+00> : vector<8xf32>
    %99 = vector.multi_reduction <add>, %98, %cst_32 [1] : vector<8x32xf32> to vector<8xf32>
    %100 = vector.shape_cast %99 : vector<8xf32> to vector<8x1xf32>
    %cst_33 = arith.constant 3.125000e-02 : f32
    %101 = vector.broadcast %cst_33 : f32 to vector<8x1xf32>
    %102 = arith.mulf %97, %101 : vector<8x1xf32>
    %cst_34 = arith.constant 3.125000e-02 : f32
    %103 = vector.broadcast %cst_34 : f32 to vector<8x1xf32>
    %104 = arith.mulf %100, %103 : vector<8x1xf32>
    %105 = arith.mulf %102, %102 : vector<8x1xf32>
    %106 = arith.subf %104, %105 : vector<8x1xf32>
    %c0_35 = arith.constant 0 : index
    %c0_36 = arith.constant 0 : index
    %107 = vector.load %arg5[%c0_35, %c0_36] : memref<8x1xf32, #tpu.memory_space<vmem>>, vector<8x1xf32>
    %cst_37 = arith.constant 9.99999974E-6 : f32
    %108 = vector.broadcast %cst_37 : f32 to vector<8x1xf32>
    %109 = arith.addf %106, %108 : vector<8x1xf32>
    %110 = math.rsqrt %109 : vector<8x1xf32>
    %111 = arith.mulf %107, %110 : vector<8x1xf32>
    %c0_38 = arith.constant 0 : index
    %c0_39 = arith.constant 0 : index
    %112 = vector.load %arg6[%c0_38, %c0_39] : memref<8x1xf32, #tpu.memory_space<vmem>>, vector<8x1xf32>
    %113 = arith.mulf %102, %111 : vector<8x1xf32>
    %114 = arith.subf %112, %113 : vector<8x1xf32>
    %115 = vector.broadcast %111 : vector<8x1xf32> to vector<8x32xf32>
    %116 = arith.mulf %95, %115 : vector<8x32xf32>
    %117 = vector.broadcast %114 : vector<8x1xf32> to vector<8x32xf32>
    %118 = arith.addf %116, %117 : vector<8x32xf32>
    %cst_40 = arith.constant 0.000000e+00 : f32
    %119 = vector.broadcast %cst_40 : f32 to vector<8x32xf32>
    %120 = arith.maximumf %118, %119 : vector<8x32xf32>
    %121 = vector.extract_strided_slice %120 {offsets = [0, 0], sizes = [8, 31], strides = [1, 1]} : vector<8x32xf32> to vector<8x31xf32>
    %122 = tpu.concatenate %38, %121 in 1 : vector<8x1xf32>, vector<8x31xf32> -> vector<8x32xf32>
    %cst_41 = arith.constant 0.000000e+00 : f32
    %123 = vector.shape_cast %19 : vector<1x32xi1> to vector<1x32xi1>
    %124 = vector.broadcast %123 : vector<1x32xi1> to vector<8x32xi1>
    %125 = vector.broadcast %cst_41 : f32 to vector<8x32xf32>
    %126 = arith.select %124, %122, %125 : vector<8x32xi1>, vector<8x32xf32>
    %127 = vector.extract_strided_slice %120 {offsets = [0, 1], sizes = [8, 31], strides = [1, 1]} : vector<8x32xf32> to vector<8x31xf32>
    %128 = tpu.concatenate %127, %38 in 1 : vector<8x31xf32>, vector<8x1xf32> -> vector<8x32xf32>
    %cst_42 = arith.constant 0.000000e+00 : f32
    %129 = vector.shape_cast %37 : vector<1x32xi1> to vector<1x32xi1>
    %130 = vector.broadcast %129 : vector<1x32xi1> to vector<8x32xi1>
    %131 = vector.broadcast %cst_42 : f32 to vector<8x32xf32>
    %132 = arith.select %130, %128, %131 : vector<8x32xi1>, vector<8x32xf32>
    %133 = tpu.concatenate %126, %120, %132 in 0 : vector<8x32xf32>, vector<8x32xf32>, vector<8x32xf32> -> vector<24x32xf32>
    %134 = arith.truncf %133 : vector<24x32xf32> to vector<24x32xbf16>
    %c0_43 = arith.constant 0 : index
    %c0_44 = arith.constant 0 : index
    %135 = vector.load %arg7[%c0_43, %c0_44] : memref<8x24xbf16, #tpu.memory_space<vmem>>, vector<8x24xbf16>
    %cst_45 = arith.constant dense<0.000000e+00> : vector<8x32xf32>
    %136 = tpu.matmul %135, %134, %cst_45 {dimension_numbers = #tpu.dot_dimension_numbers<[1], [0], [0], [1], [0, 0, 1, 1], [], []>} : vector<8x24xbf16>, vector<24x32xbf16>, vector<8x32xf32> -> vector<8x32xf32>
    %cst_46 = arith.constant dense<0.000000e+00> : vector<8xf32>
    %137 = vector.multi_reduction <add>, %136, %cst_46 [1] : vector<8x32xf32> to vector<8xf32>
    %138 = vector.shape_cast %137 : vector<8xf32> to vector<8x1xf32>
    %139 = arith.mulf %136, %136 : vector<8x32xf32>
    %cst_47 = arith.constant dense<0.000000e+00> : vector<8xf32>
    %140 = vector.multi_reduction <add>, %139, %cst_47 [1] : vector<8x32xf32> to vector<8xf32>
    %141 = vector.shape_cast %140 : vector<8xf32> to vector<8x1xf32>
    %cst_48 = arith.constant 3.125000e-02 : f32
    %142 = vector.broadcast %cst_48 : f32 to vector<8x1xf32>
    %143 = arith.mulf %138, %142 : vector<8x1xf32>
    %cst_49 = arith.constant 3.125000e-02 : f32
    %144 = vector.broadcast %cst_49 : f32 to vector<8x1xf32>
    %145 = arith.mulf %141, %144 : vector<8x1xf32>
    %146 = arith.mulf %143, %143 : vector<8x1xf32>
    %147 = arith.subf %145, %146 : vector<8x1xf32>
    %c0_50 = arith.constant 0 : index
    %c0_51 = arith.constant 0 : index
    %148 = vector.load %arg8[%c0_50, %c0_51] : memref<8x1xf32, #tpu.memory_space<vmem>>, vector<8x1xf32>
    %cst_52 = arith.constant 9.99999974E-6 : f32
    %149 = vector.broadcast %cst_52 : f32 to vector<8x1xf32>
    %150 = arith.addf %147, %149 : vector<8x1xf32>
    %151 = math.rsqrt %150 : vector<8x1xf32>
    %152 = arith.mulf %148, %151 : vector<8x1xf32>
    %c0_53 = arith.constant 0 : index
    %c0_54 = arith.constant 0 : index
    %153 = vector.load %arg9[%c0_53, %c0_54] : memref<8x1xf32, #tpu.memory_space<vmem>>, vector<8x1xf32>
    %154 = arith.mulf %143, %152 : vector<8x1xf32>
    %155 = arith.subf %153, %154 : vector<8x1xf32>
    %156 = vector.broadcast %152 : vector<8x1xf32> to vector<8x32xf32>
    %157 = arith.mulf %136, %156 : vector<8x32xf32>
    %158 = vector.broadcast %155 : vector<8x1xf32> to vector<8x32xf32>
    %159 = arith.addf %157, %158 : vector<8x32xf32>
    %c0_55 = arith.constant 0 : index
    %c0_56 = arith.constant 0 : index
    %160 = vector.load %arg10[%c0_55, %c0_56] : memref<8x8xbf16, #tpu.memory_space<vmem>>, vector<8x8xbf16>
    %161 = arith.truncf %0 : vector<8x32xf32> to vector<8x32xbf16>
    %cst_57 = arith.constant dense<0.000000e+00> : vector<8x32xf32>
    %162 = tpu.matmul %160, %161, %cst_57 {dimension_numbers = #tpu.dot_dimension_numbers<[1], [0], [0], [1], [0, 0, 1, 1], [], []>} : vector<8x8xbf16>, vector<8x32xbf16>, vector<8x32xf32> -> vector<8x32xf32>
    %cst_58 = arith.constant dense<0.000000e+00> : vector<8xf32>
    %163 = vector.multi_reduction <add>, %162, %cst_58 [1] : vector<8x32xf32> to vector<8xf32>
    %164 = vector.shape_cast %163 : vector<8xf32> to vector<8x1xf32>
    %165 = arith.mulf %162, %162 : vector<8x32xf32>
    %cst_59 = arith.constant dense<0.000000e+00> : vector<8xf32>
    %166 = vector.multi_reduction <add>, %165, %cst_59 [1] : vector<8x32xf32> to vector<8xf32>
    %167 = vector.shape_cast %166 : vector<8xf32> to vector<8x1xf32>
    %cst_60 = arith.constant 3.125000e-02 : f32
    %168 = vector.broadcast %cst_60 : f32 to vector<8x1xf32>
    %169 = arith.mulf %164, %168 : vector<8x1xf32>
    %cst_61 = arith.constant 3.125000e-02 : f32
    %170 = vector.broadcast %cst_61 : f32 to vector<8x1xf32>
    %171 = arith.mulf %167, %170 : vector<8x1xf32>
    %172 = arith.mulf %169, %169 : vector<8x1xf32>
    %173 = arith.subf %171, %172 : vector<8x1xf32>
    %c0_62 = arith.constant 0 : index
    %c0_63 = arith.constant 0 : index
    %174 = vector.load %arg11[%c0_62, %c0_63] : memref<8x1xf32, #tpu.memory_space<vmem>>, vector<8x1xf32>
    %cst_64 = arith.constant 9.99999974E-6 : f32
    %175 = vector.broadcast %cst_64 : f32 to vector<8x1xf32>
    %176 = arith.addf %173, %175 : vector<8x1xf32>
    %177 = math.rsqrt %176 : vector<8x1xf32>
    %178 = arith.mulf %174, %177 : vector<8x1xf32>
    %c0_65 = arith.constant 0 : index
    %c0_66 = arith.constant 0 : index
    %179 = vector.load %arg12[%c0_65, %c0_66] : memref<8x1xf32, #tpu.memory_space<vmem>>, vector<8x1xf32>
    %180 = arith.mulf %169, %178 : vector<8x1xf32>
    %181 = arith.subf %179, %180 : vector<8x1xf32>
    %182 = vector.broadcast %178 : vector<8x1xf32> to vector<8x32xf32>
    %183 = arith.mulf %162, %182 : vector<8x32xf32>
    %184 = vector.broadcast %181 : vector<8x1xf32> to vector<8x32xf32>
    %185 = arith.addf %183, %184 : vector<8x32xf32>
    %186 = arith.addf %159, %185 : vector<8x32xf32>
    %cst_67 = arith.constant 0.000000e+00 : f32
    %187 = vector.broadcast %cst_67 : f32 to vector<8x32xf32>
    %188 = arith.maximumf %186, %187 : vector<8x32xf32>
    %c0_68 = arith.constant 0 : index
    %c0_69 = arith.constant 0 : index
    %189 = vector.load %arg13[%c0_68, %c0_69] : memref<8x32xf32, #tpu.memory_space<vmem>>, vector<8x32xf32>
    tpu.vector_store %arg13[%c0_68, %c0_69], %188 {strides = array<i32>} : memref<8x32xf32, #tpu.memory_space<vmem>>, vector<8x32xf32>,
    return
  }
}

</mosaic_0001>

<llo_original>
// kernel: tpu_custom_call.1
$region0: #{tpu_custom_call.1}
  #allocation0 [shape = 'u32[]', space=smem, size = 0x4, offset = 0x4, fixed_abs, tag = 'smem constant byte address 0x4 - core index']
  #allocation1 [shape = 'u32[144,128]{1,0:T(1,128)}', space=vmem, size = 0x12000, scoped, tag = 'internal scratch']
  %s0 = inlined_call_operand.vmem [shape: f32[8,32], index: 0, kind: input, shape index: {}]
  %s1 = inlined_call_operand.vmem [shape: bf16[8,24], index: 1, kind: input, shape index: {}]
  %s2 = inlined_call_operand.vmem [shape: f32[8,1], index: 2, kind: input, shape index: {}]
  %s3 = inlined_call_operand.vmem [shape: f32[8,1], index: 3, kind: input, shape index: {}]
  %s4 = inlined_call_operand.vmem [shape: bf16[8,24], index: 4, kind: input, shape index: {}]
  %s5 = inlined_call_operand.vmem [shape: f32[8,1], index: 5, kind: input, shape index: {}]
  %s6 = inlined_call_operand.vmem [shape: f32[8,1], index: 6, kind: input, shape index: {}]
  %s7 = inlined_call_operand.vmem [shape: bf16[8,24], index: 7, kind: input, shape index: {}]
  %s8 = inlined_call_operand.vmem [shape: f32[8,1], index: 8, kind: input, shape index: {}]
  %s9 = inlined_call_operand.vmem [shape: f32[8,1], index: 9, kind: input, shape index: {}]
  %s10 = inlined_call_operand.vmem [shape: bf16[8,8], index: 10, kind: input, shape index: {}]
  %s11 = inlined_call_operand.vmem [shape: f32[8,1], index: 11, kind: input, shape index: {}]
  %s12 = inlined_call_operand.vmem [shape: f32[8,1], index: 12, kind: input, shape index: {}]
  %s13 = inlined_call_operand.hbm [shape: f32[8,32], index: 13, kind: output, shape index: {}]
  %s14 = sld [smem:[#allocation0]]
  $region62: #{tpu_custom_call.1} parent=0
    _
  %s16 = ssub.s32 1, %s14
  %s17 = scalar_select 0, %s16, %s14
  $region1: #{tpu_custom_call.1} parent=0
    #allocation2 [shape = 'u8[4096]{0}', space=vmem, size = 0x1000, scoped, tag = 'output window, operand 0, single buffered']
    #allocation3 [shape = 's32[1]{0}', space=sflag, size = 0x4, scoped, tag = 'scoped memory for tpu_custom_call.1']
    %18 = vsyncpa [#allocation3], 0
    // Predicated region
    $region2: #{tpu_custom_call.1} parent=1 // pred_check
      _
    $region3: #{tpu_custom_call.1} parent=1 // pred_check_branch
      %20 = sbr.rel (0) target = $region5
    $region4: #{tpu_custom_call.1} parent=1 // pred_region
      _
    $region5: #{tpu_custom_call.1} parent=1 // pred_fallthru
      _
    // Predicated region
    $region6: #{tpu_custom_call.1} parent=1 // pred_check
      _
    $region7: #{tpu_custom_call.1} parent=1 // pred_check_branch
      %22 = sbr.rel (0) target = $region9
    $region8: #{tpu_custom_call.1} parent=1 // pred_region
      _
    $region9: #{tpu_custom_call.1} parent=1 // pred_fallthru
      _
    // Predicated region
    $region10: #{tpu_custom_call.1} parent=1 // pred_check
      _
    $region11: #{tpu_custom_call.1} parent=1 // pred_check_branch
      %24 = sbr.rel (0) target = $region13
    $region12: #{tpu_custom_call.1} parent=1 // pred_region
      _
    $region13: #{tpu_custom_call.1} parent=1 // pred_fallthru
      _
    // Predicated region
    $region14: #{tpu_custom_call.1} parent=1 // pred_check
      _
    $region15: #{tpu_custom_call.1} parent=1 // pred_check_branch
      %26 = sbr.rel (0) target = $region17
    $region16: #{tpu_custom_call.1} parent=1 // pred_region
      _
    $region17: #{tpu_custom_call.1} parent=1 // pred_fallthru
      _
    // Predicated region
    $region18: #{tpu_custom_call.1} parent=1 // pred_check
      _
    $region19: #{tpu_custom_call.1} parent=1 // pred_check_branch
      %28 = sbr.rel (0) target = $region21
    $region20: #{tpu_custom_call.1} parent=1 // pred_region
      _
    $region21: #{tpu_custom_call.1} parent=1 // pred_fallthru
      _
    // Predicated region
    $region22: #{tpu_custom_call.1} parent=1 // pred_check
      _
    $region23: #{tpu_custom_call.1} parent=1 // pred_check_branch
      %30 = sbr.rel (0) target = $region25
    $region24: #{tpu_custom_call.1} parent=1 // pred_region
      _
    $region25: #{tpu_custom_call.1} parent=1 // pred_fallthru
      _
    // Predicated region
    $region26: #{tpu_custom_call.1} parent=1 // pred_check
      _
    $region27: #{tpu_custom_call.1} parent=1 // pred_check_branch
      %32 = sbr.rel (0) target = $region29
    $region28: #{tpu_custom_call.1} parent=1 // pred_region
      _
    $region29: #{tpu_custom_call.1} parent=1 // pred_fallthru
      _
    // Predicated region
    $region30: #{tpu_custom_call.1} parent=1 // pred_check
      _
    $region31: #{tpu_custom_call.1} parent=1 // pred_check_branch
      %34 = sbr.rel (0) target = $region33
    $region32: #{tpu_custom_call.1} parent=1 // pred_region
      _
    $region33: #{tpu_custom_call.1} parent=1 // pred_fallthru
      _
    // Predicated region
    $region34: #{tpu_custom_call.1} parent=1 // pred_check
      _
    $region35: #{tpu_custom_call.1} parent=1 // pred_check_branch
      %36 = sbr.rel (0) target = $region37
    $region36: #{tpu_custom_call.1} parent=1 // pred_region
      _
    $region37: #{tpu_custom_call.1} parent=1 // pred_fallthru
      _
    // Predicated region
    $region38: #{tpu_custom_call.1} parent=1 // pred_check
      _
    $region39: #{tpu_custom_call.1} parent=1 // pred_check_branch
      %38 = sbr.rel (0) target = $region41
    $region40: #{tpu_custom_call.1} parent=1 // pred_region
      _
    $region41: #{tpu_custom_call.1} parent=1 // pred_fallthru
      _
    // Predicated region
    $region42: #{tpu_custom_call.1} parent=1 // pred_check
      _
    $region43: #{tpu_custom_call.1} parent=1 // pred_check_branch
      %40 = sbr.rel (0) target = $region45
    $region44: #{tpu_custom_call.1} parent=1 // pred_region
      _
    $region45: #{tpu_custom_call.1} parent=1 // pred_fallthru
      _
    // Predicated region
    $region46: #{tpu_custom_call.1} parent=1 // pred_check
      _
    $region47: #{tpu_custom_call.1} parent=1 // pred_check_branch
      %42 = sbr.rel (0) target = $region49
    $region48: #{tpu_custom_call.1} parent=1 // pred_region
      _
    $region49: #{tpu_custom_call.1} parent=1 // pred_fallthru
      _
    // Predicated region
    $region50: #{tpu_custom_call.1} parent=1 // pred_check
      _
    $region51: #{tpu_custom_call.1} parent=1 // pred_check_branch
      %44 = sbr.rel (0) target = $region53
    $region52: #{tpu_custom_call.1} parent=1 // pred_region
      _
    $region53: #{tpu_custom_call.1} parent=1 // pred_fallthru
      _
    %v46 = vld [vmem:[%s0] sm:$0xff]
    %v47 = vlaneseq
    %v48 = vand.u32 %v47, 127
    %vm49 = vcmp.lt.s32.totalorder %v48, 0
    %v50 = vsub.s32 0, %v48
    %v51 = vsel %vm49, %v50, %v48
    %v52 = vshrl.u32 %v51, 4
    %v53 = vand.u32 %v51, 15
    %v54 = vsub.s32 0, %v53
    %v55 = vsel %vm49, %v54, %v53
    %vm56 = vcmp.ne.s32.totalorder %v55, 0
    %vm57 = vcmp.lt.s32.totalorder %v55, 0
    %vm58 = vmand %vm57, %vm56
    %v59 = vadd.s32 %v55, 16
    %v60 = vsel %vm58, %v59, %v55
    %vm61 = vcmp.ne.s32.totalorder %v60, 0
    %vm62 = vcmp.ne.s32.totalorder %v60, 15
    %64 = vrot.lane.b32.xlu0 %v46, 1
    %v65 = vpop.permute.xlu0 %64
    %vm67 = vcmask 7168
    %v68 = vsel %vm67, 0.0, %v65
    %v69 = vsel %vm61, 1, 0
    %vm70 = vcmp.eq.s32.totalorder %v69, 1
    %v71 = vsel %vm70, %v68, 0.0
    %72 = vrot.lane.b32.xlu0 %v46, 127
    %v73 = vpop.permute.xlu0 %72
    %vm75 = vcmask 252928
    %v76 = vsel %vm75, %v73, 0.0
    %v77 = vsel %vm62, 1, 0
    %vm78 = vcmp.eq.s32.totalorder %v77, 1
    %v79 = vsel %vm78, %v76, 0.0
    %v80 = vpack.c.bf16 %v46, %v71
    %v81 = vpack.c.bf16 %v79, %v79
    %v82 = vld [vmem:[%s1] sm:$0xf]
    %vm83 = vcmask 195584
    %v85 = vsel %vm83, %v82, 0
    %vm87 = vcmask 1043456
    %v89 = vsel %vm87, %v81, 0
    %91 = vmatprep.subr.bf16.mxu0 0
    %92 = vmatpush1.bf16.msra.mxu0 %v80
    %93 = vmatprep.subr.bf16.mxu0 0
    %94 = vmatpush1.bf16.msra.mxu0 %v89
    %95 = vmatprep.subr.bf16.mxu0 0
    %96 = vmatpush1.bf16.msra.mxu0 0
    %97 = vmatprep.subr.bf16.mxu0 0
    %98 = vmatpush1.bf16.msra.mxu0 0
    %99 = vmatprep.subr.bf16.mxu0 0
    %100 = vmatpush1.bf16.msra.mxu0 0
    %101 = vmatprep.subr.bf16.mxu0 0
    %102 = vmatpush1.bf16.msra.mxu0 0
    %103 = vmatprep.subr.bf16.mxu0 0
    %104 = vmatpush1.bf16.msra.mxu0 0
    %105 = vmatprep.subr.bf16.mxu0 0
    %106 = vmatpush1.bf16.msra.mxu0 0
    %107 = vmatprep.subr.bf16.mxu0 0
    %108 = vmatpush1.bf16.msra.mxu0 0
    %109 = vmatprep.subr.bf16.mxu0 0
    %110 = vmatpush1.bf16.msra.mxu0 0
    %111 = vmatprep.subr.bf16.mxu0 0
    %112 = vmatpush1.bf16.msra.mxu0 0
    %113 = vmatprep.subr.bf16.mxu0 0
    %114 = vmatpush1.bf16.msra.mxu0 0
    %115 = vmatprep.subr.bf16.mxu0 0
    %116 = vmatpush1.bf16.msra.mxu0 0
    %117 = vmatprep.subr.bf16.mxu0 0
    %118 = vmatpush1.bf16.msra.mxu0 0
    %119 = vmatprep.subr.bf16.mxu0 0
    %120 = vmatpush1.bf16.msra.mxu0 0
    %121 = vmatprep.subr.bf16.mxu0 0
    %122 = vmatpush1.bf16.msra.mxu0 0
    %123 = vmatprep.mubr.bf16.mxu0 0
    %124 = vmatmul.mubr.bf16.gmra.mrb[0].mxu0 %v85
    %v125 = vpop.f32.mrb[0].mxu0
    %v126 = vadd.f32 0.0, %v125
    %v127 = vpop.f32.mrb[0].mxu0
    %v128 = vpop.f32.mrb[0].mxu0
    %v129 = vpop.f32.mrb[0].mxu0
    %130 = vdwg.mxu0
    %vm131 = vcmask 261120
    %v132 = vsel %vm131, %v126, 0.0
    %133 = vadd.xlane.f32.xlu0 %v132
    %v134 = vpop.xlane.xlu0 %133
    %v135 = vmul.f32 %v126, %v126
    %v136 = vsel %vm131, %v135, 0.0
    %137 = vadd.xlane.f32.xlu0 %v136
    %v138 = vpop.xlane.xlu0 %137
    %v139 = vmul.f32 %v134, 0.03125
    %v140 = vmul.f32 %v138, 0.03125
    %v141 = vmul.f32 %v139, %v139
    %v142 = vsub.f32 %v140, %v141
    %v143 = vld [vmem:[%s2] sm:$0xff]
    %v144 = vadd.f32 %v142, 1e-05
    %v145 = vrsqrt.pop %v144
    %v146 = vmul.f32 %v143, %v145
    %v147 = vld [vmem:[%s3] sm:$0xff]
    %v148 = vmul.f32 %v139, %v146
    %v149 = vsub.f32 %v147, %v148
    %151 = vset.pattern.permute.xlu0 0
    %152 = vperm.xlu0 %151, %v146
    %v153 = vpop.permute.xlu0 %152
    %v155 = vmul.f32 %v126, %v153
    %157 = vset.pattern.permute.xlu0 0
    %158 = vperm.xlu0 %157, %v149
    %v159 = vpop.permute.xlu0 %158
    %v161 = vadd.f32 %v155, %v159
    %v162 = vmax.f32 %v161, 0.0
    %164 = vrot.lane.b32.xlu0 %v162, 1
    %v165 = vpop.permute.xlu0 %164
    %v167 = vsel %vm67, 0.0, %v165
    %v168 = vsel %vm70, %v167, 0.0
    %169 = vrot.lane.b32.xlu0 %v162, 127
    %v170 = vpop.permute.xlu0 %169
    %v172 = vsel %vm75, %v170, 0.0
    %v173 = vsel %vm78, %v172, 0.0
    %v174 = vpack.c.bf16 %v162, %v168
    %v175 = vpack.c.bf16 %v173, %v173
    %v176 = vld [vmem:[%s4] sm:$0xf]
    %v178 = vsel %vm83, %v176, 0
    %v181 = vsel %vm87, %v175, 0
    %183 = vmatprep.subr.bf16.mxu0 0
    %184 = vmatpush1.bf16.msra.mxu0 %v174
    %185 = vmatprep.subr.bf16.mxu0 0
    %186 = vmatpush1.bf16.msra.mxu0 %v181
    %187 = vmatprep.subr.bf16.mxu0 0
    %188 = vmatpush1.bf16.msra.mxu0 0
    %189 = vmatprep.subr.bf16.mxu0 0
    %190 = vmatpush1.bf16.msra.mxu0 0
    %191 = vmatprep.subr.bf16.mxu0 0
    %192 = vmatpush1.bf16.msra.mxu0 0
    %193 = vmatprep.subr.bf16.mxu0 0
    %194 = vmatpush1.bf16.msra.mxu0 0
    %195 = vmatprep.subr.bf16.mxu0 0
    %196 = vmatpush1.bf16.msra.mxu0 0
    %197 = vmatprep.subr.bf16.mxu0 0
    %198 = vmatpush1.bf16.msra.mxu0 0
    %199 = vmatprep.subr.bf16.mxu0 0
    %200 = vmatpush1.bf16.msra.mxu0 0
    %201 = vmatprep.subr.bf16.mxu0 0
    %202 = vmatpush1.bf16.msra.mxu0 0
    %203 = vmatprep.subr.bf16.mxu0 0
    %204 = vmatpush1.bf16.msra.mxu0 0
    %205 = vmatprep.subr.bf16.mxu0 0
    %206 = vmatpush1.bf16.msra.mxu0 0
    %207 = vmatprep.subr.bf16.mxu0 0
    %208 = vmatpush1.bf16.msra.mxu0 0
    %209 = vmatprep.subr.bf16.mxu0 0
    %210 = vmatpush1.bf16.msra.mxu0 0
    %211 = vmatprep.subr.bf16.mxu0 0
    %212 = vmatpush1.bf16.msra.mxu0 0
    %213 = vmatprep.subr.bf16.mxu0 0
    %214 = vmatpush1.bf16.msra.mxu0 0
    %215 = vmatprep.mubr.bf16.mxu0 0
    %216 = vmatmul.mubr.bf16.gmra.mrb[0].mxu0 %v178
    %v217 = vpop.f32.mrb[0].mxu0
    %v218 = vadd.f32 0.0, %v217
    %v219 = vpop.f32.mrb[0].mxu0
    %v220 = vpop.f32.mrb[0].mxu0
    %v221 = vpop.f32.mrb[0].mxu0
    %222 = vdwg.mxu0
    %v223 = vsel %vm131, %v218, 0.0
    %224 = vadd.xlane.f32.xlu0 %v223
    %v225 = vpop.xlane.xlu0 %224
    %v226 = vmul.f32 %v218, %v218
    %v227 = vsel %vm131, %v226, 0.0
    %228 = vadd.xlane.f32.xlu0 %v227
    %v229 = vpop.xlane.xlu0 %228
    %v230 = vmul.f32 %v225, 0.03125
    %v231 = vmul.f32 %v229, 0.03125
    %v232 = vmul.f32 %v230, %v230
    %v233 = vsub.f32 %v231, %v232
    %v234 = vld [vmem:[%s5] sm:$0xff]
    %v235 = vadd.f32 %v233, 1e-05
    %v236 = vrsqrt.pop %v235
    %v237 = vmul.f32 %v234, %v236
    %v238 = vld [vmem:[%s6] sm:$0xff]
    %v239 = vmul.f32 %v230, %v237
    %v240 = vsub.f32 %v238, %v239
    %242 = vset.pattern.permute.xlu0 0
    %243 = vperm.xlu0 %242, %v237
    %v244 = vpop.permute.xlu0 %243
    %v246 = vmul.f32 %v218, %v244
    %248 = vset.pattern.permute.xlu0 0
    %249 = vperm.xlu0 %248, %v240
    %v250 = vpop.permute.xlu0 %249
    %v252 = vadd.f32 %v246, %v250
    %v253 = vmax.f32 %v252, 0.0
    %255 = vrot.lane.b32.xlu0 %v253, 1
    %v256 = vpop.permute.xlu0 %255
    %v258 = vsel %vm67, 0.0, %v256
    %v259 = vsel %vm70, %v258, 0.0
    %260 = vrot.lane.b32.xlu0 %v253, 127
    %v261 = vpop.permute.xlu0 %260
    %v263 = vsel %vm75, %v261, 0.0
    %v264 = vsel %vm78, %v263, 0.0
    %v265 = vpack.c.bf16 %v253, %v259
    %v266 = vpack.c.bf16 %v264, %v264
    %v267 = vld [vmem:[%s7] sm:$0xf]
    %v269 = vsel %vm83, %v267, 0
    %v272 = vsel %vm87, %v266, 0
    %274 = vmatprep.subr.bf16.mxu0 0
    %275 = vmatpush1.bf16.msra.mxu0 %v265
    %276 = vmatprep.subr.bf16.mxu0 0
    %277 = vmatpush1.bf16.msra.mxu0 %v272
    %278 = vmatprep.subr.bf16.mxu0 0
    %279 = vmatpush1.bf16.msra.mxu0 0
    %280 = vmatprep.subr.bf16.mxu0 0
    %281 = vmatpush1.bf16.msra.mxu0 0
    %282 = vmatprep.subr.bf16.mxu0 0
    %283 = vmatpush1.bf16.msra.mxu0 0
    %284 = vmatprep.subr.bf16.mxu0 0
    %285 = vmatpush1.bf16.msra.mxu0 0
    %286 = vmatprep.subr.bf16.mxu0 0
    %287 = vmatpush1.bf16.msra.mxu0 0
    %288 = vmatprep.subr.bf16.mxu0 0
    %289 = vmatpush1.bf16.msra.mxu0 0
    %290 = vmatprep.subr.bf16.mxu0 0
    %291 = vmatpush1.bf16.msra.mxu0 0
    %292 = vmatprep.subr.bf16.mxu0 0
    %293 = vmatpush1.bf16.msra.mxu0 0
    %294 = vmatprep.subr.bf16.mxu0 0
    %295 = vmatpush1.bf16.msra.mxu0 0
    %296 = vmatprep.subr.bf16.mxu0 0
    %297 = vmatpush1.bf16.msra.mxu0 0
    %298 = vmatprep.subr.bf16.mxu0 0
    %299 = vmatpush1.bf16.msra.mxu0 0
    %300 = vmatprep.subr.bf16.mxu0 0
    %301 = vmatpush1.bf16.msra.mxu0 0
    %302 = vmatprep.subr.bf16.mxu0 0
    %303 = vmatpush1.bf16.msra.mxu0 0
    %304 = vmatprep.subr.bf16.mxu0 0
    %305 = vmatpush1.bf16.msra.mxu0 0
    %306 = vmatprep.mubr.bf16.mxu0 0
    %307 = vmatmul.mubr.bf16.gmra.mrb[0].mxu0 %v269
    %v308 = vpop.f32.mrb[0].mxu0
    %v309 = vadd.f32 0.0, %v308
    %v310 = vpop.f32.mrb[0].mxu0
    %v311 = vpop.f32.mrb[0].mxu0
    %v312 = vpop.f32.mrb[0].mxu0
    %313 = vdwg.mxu0
    %v314 = vsel %vm131, %v309, 0.0
    %315 = vadd.xlane.f32.xlu0 %v314
    %v316 = vpop.xlane.xlu0 %315
    %v317 = vmul.f32 %v309, %v309
    %v318 = vsel %vm131, %v317, 0.0
    %319 = vadd.xlane.f32.xlu0 %v318
    %v320 = vpop.xlane.xlu0 %319
    %v321 = vmul.f32 %v316, 0.03125
    %v322 = vmul.f32 %v320, 0.03125
    %v323 = vmul.f32 %v321, %v321
    %v324 = vsub.f32 %v322, %v323
    %v325 = vld [vmem:[%s8] sm:$0xff]
    %v326 = vadd.f32 %v324, 1e-05
    %v327 = vrsqrt.pop %v326
    %v328 = vmul.f32 %v325, %v327
    %v329 = vld [vmem:[%s9] sm:$0xff]
    %v330 = vmul.f32 %v321, %v328
    %v331 = vsub.f32 %v329, %v330
    %333 = vset.pattern.permute.xlu0 0
    %334 = vperm.xlu0 %333, %v328
    %v335 = vpop.permute.xlu0 %334
    %v337 = vmul.f32 %v309, %v335
    %339 = vset.pattern.permute.xlu0 0
    %340 = vperm.xlu0 %339, %v331
    %v341 = vpop.permute.xlu0 %340
    %v343 = vadd.f32 %v337, %v341
    %v344 = vld [vmem:[%s10] sm:$0xf]
    %v345 = vpack.c.bf16 %v46, %v46
    %vm346 = vcmask 64512
    %v348 = vsel %vm346, %v344, 0
    %v351 = vsel %vm87, %v345, 0
    %353 = vmatprep.subr.bf16.mxu0 0
    %354 = vmatpush1.bf16.msra.mxu0 %v351
    %355 = vmatprep.subr.bf16.mxu0 0
    %356 = vmatpush1.bf16.msra.mxu0 0
    %357 = vmatprep.subr.bf16.mxu0 0
    %358 = vmatpush1.bf16.msra.mxu0 0
    %359 = vmatprep.subr.bf16.mxu0 0
    %360 = vmatpush1.bf16.msra.mxu0 0
    %361 = vmatprep.subr.bf16.mxu0 0
    %362 = vmatpush1.bf16.msra.mxu0 0
    %363 = vmatprep.subr.bf16.mxu0 0
    %364 = vmatpush1.bf16.msra.mxu0 0
    %365 = vmatprep.subr.bf16.mxu0 0
    %366 = vmatpush1.bf16.msra.mxu0 0
    %367 = vmatprep.subr.bf16.mxu0 0
    %368 = vmatpush1.bf16.msra.mxu0 0
    %369 = vmatprep.subr.bf16.mxu0 0
    %370 = vmatpush1.bf16.msra.mxu0 0
    %371 = vmatprep.subr.bf16.mxu0 0
    %372 = vmatpush1.bf16.msra.mxu0 0
    %373 = vmatprep.subr.bf16.mxu0 0
    %374 = vmatpush1.bf16.msra.mxu0 0
    %375 = vmatprep.subr.bf16.mxu0 0
    %376 = vmatpush1.bf16.msra.mxu0 0
    %377 = vmatprep.subr.bf16.mxu0 0
    %378 = vmatpush1.bf16.msra.mxu0 0
    %379 = vmatprep.subr.bf16.mxu0 0
    %380 = vmatpush1.bf16.msra.mxu0 0
    %381 = vmatprep.subr.bf16.mxu0 0
    %382 = vmatpush1.bf16.msra.mxu0 0
    %383 = vmatprep.subr.bf16.mxu0 0
    %384 = vmatpush1.bf16.msra.mxu0 0
    %385 = vmatprep.mubr.bf16.mxu0 0
    %386 = vmatmul.mubr.bf16.gmra.mrb[0].mxu0 %v348
    %v387 = vpop.f32.mrb[0].mxu0
    %v388 = vadd.f32 0.0, %v387
    %v389 = vpop.f32.mrb[0].mxu0
    %v390 = vpop.f32.mrb[0].mxu0
    %v391 = vpop.f32.mrb[0].mxu0
    %392 = vdwg.mxu0
    %v393 = vsel %vm131, %v388, 0.0
    %394 = vadd.xlane.f32.xlu0 %v393
    %v395 = vpop.xlane.xlu0 %394
    %v396 = vmul.f32 %v388, %v388
    %v397 = vsel %vm131, %v396, 0.0
    %398 = vadd.xlane.f32.xlu0 %v397
    %v399 = vpop.xlane.xlu0 %398
    %v400 = vmul.f32 %v395, 0.03125
    %v401 = vmul.f32 %v399, 0.03125
    %v402 = vmul.f32 %v400, %v400
    %v403 = vsub.f32 %v401, %v402
    %v404 = vld [vmem:[%s11] sm:$0xff]
    %v405 = vadd.f32 %v403, 1e-05
    %v406 = vrsqrt.pop %v405
    %v407 = vmul.f32 %v404, %v406
    %v408 = vld [vmem:[%s12] sm:$0xff]
    %v409 = vmul.f32 %v400, %v407
    %v410 = vsub.f32 %v408, %v409
    %412 = vset.pattern.permute.xlu0 0
    %413 = vperm.xlu0 %412, %v407
    %v414 = vpop.permute.xlu0 %413
    %v416 = vmul.f32 %v388, %v414
    %418 = vset.pattern.permute.xlu0 0
    %419 = vperm.xlu0 %418, %v410
    %v420 = vpop.permute.xlu0 %419
    %v422 = vadd.f32 %v416, %v420
    %v423 = vadd.f32 %v343, %v422
    %v424 = vmax.f32 %v423, 0.0
    %425 = vst.msk [vmem:[#allocation2] sm:$0xff] %vm131, %v424
    // Predicated region
    $region54: #{tpu_custom_call.1} parent=1 // pred_check
      _
    $region55: #{tpu_custom_call.1} parent=1 // pred_check_branch
      %427 = sbr.rel (0) target = $region57
    $region56: #{tpu_custom_call.1} parent=1 // pred_region
      %s429 = ssub.s32 128, 128
      %430 = vsyncadd [#allocation3], %s429
      %s432 = sshll.u32 [#allocation2], 4
      %s433 = int_to_ptr.vmem [resolvable:$true] %s432
      %435 = dma.vmem_to_hbm [thread:$0]  %s433, 128, %s13, [#allocation3]
    $region57: #{tpu_custom_call.1} parent=1 // pred_fallthru
      _
    // Predicated region
    $region58: #{tpu_custom_call.1} parent=1 // pred_check
      _
    $region59: #{tpu_custom_call.1} parent=1 // pred_check_branch
      %437 = sbr.rel (0) target = $region61
    $region60: #{tpu_custom_call.1} parent=1 // pred_region
      %438 = dma.done [#allocation3], 128
    $region61: #{tpu_custom_call.1} parent=1 // pred_fallthru
      _
    %439 = vsyncpa [#allocation3], 1

</llo_original>
